<compile_context>
chip_gen: v6e
topology: v6e:2x2x1
jax: 0.10.0
libtpu: 0.0.40
codegen_flags: <defaults>
</compile_context>

<pallas_src>
import functools
import math

import jax
import jax.numpy as jnp
from jax import lax
from jax.experimental import pallas as pl
from jax.experimental.pallas import tpu as pltpu

LN_EPS = 1e-5

# CompilerParams was renamed across jax versions; accept either.
_CompilerParams = getattr(pltpu, "CompilerParams", None) or getattr(
    pltpu, "TPUCompilerParams")


def _round_up(x, m):
    return (x + m - 1) // m * m


def _pad2(a, rows, cols):
    r, c = a.shape
    return jnp.pad(a, ((0, rows - r), (0, cols - c)))


# --------------------------------------------------------------------------
# Pallas kernel: folded (embed + attn + residual) -> LN1 -> FF -> LN2 -> fc-fold
# --------------------------------------------------------------------------
def encode_kernel(c_ref, w_enc_ref, ff1_w_ref, ff2_w_ref, vecs_ref, ff1_b_ref,
                  out_ref, *, h_real):
    hp = vecs_ref.shape[1]                      # padded hidden width (lane-dense)

    # packed f32 vector table (one DMA): rows =
    #   [b_enc, gamma1, beta1, ff2_b, gamma2, beta2, fc_w_src, fc_w_dst]
    b_enc = vecs_ref[0:1, :]
    g1 = vecs_ref[1:2, :]
    b1 = vecs_ref[2:3, :]
    ff2_b = vecs_ref[3:4, :]
    g2 = vecs_ref[4:5, :]
    b2 = vecs_ref[5:6, :]
    w_sd = vecs_ref[6:8, :]                     # [2, Hp]: row0=src half, row1=dst half

    # LayerNorm statistics over exactly h_real lanes (padded lanes are zero).
    lane = lax.broadcasted_iota(jnp.int32, (1, hp), 1)
    mask = (lane < h_real).astype(jnp.float32)
    inv_h = 1.0 / float(h_real)

    def layer_norm(x, g, b):
        mu = jnp.sum(x, axis=-1, keepdims=True) * inv_h      # padded lanes are 0
        d = (x - mu) * mask
        var = jnp.sum(d * d, axis=-1, keepdims=True) * inv_h
        return d * lax.rsqrt(var + LN_EPS) * g + b           # padded g, b are 0

    # bf16 MXU operands, f32 accumulation / VPU math.
    c = c_ref[...].astype(jnp.bfloat16)                       # [tm, Cc]

    # Folded: x + self_attention(x) == c @ W_enc + b_enc  (exact for seq_len==1)
    x = jnp.dot(c, w_enc_ref[...], preferred_element_type=jnp.float32) + b_enc
    x = layer_norm(x, g1, b1)                                  # [tm, Hp]

    # feedforward: Linear(H, 4H) -> ReLU -> Linear(4H, H)
    h = jnp.dot(x.astype(jnp.bfloat16), ff1_w_ref[...],
                preferred_element_type=jnp.float32) + ff1_b_ref[...]
    h = jnp.maximum(h, 0.0)                                    # [tm, Fp]
    ff = jnp.dot(h.astype(jnp.bfloat16), ff2_w_ref[...],
                 preferred_element_type=jnp.float32) + ff2_b

    z = layer_norm(x + ff, g2, b2)                             # [tm, Hp]

    # Folded decode linear, lane-dense output:
    #   out[0, j] = z[j] . fc_w[:H], out[1, j] = z[j] . fc_w[H:]
    out_ref[...] = lax.dot_general(
        w_sd, z, (((1,), (1,)), ((), ())),
        preferred_element_type=jnp.float32)                    # [2, tm]


# --------------------------------------------------------------------------
# Tiling / VMEM budgeting
# --------------------------------------------------------------------------
def _choose_tiles(n, fp, block_rows):
    # v7x has only 64 MiB VMEM/TC: keep the live [tm, Fp] FF intermediate
    # (f32 + bf16 copy) under ~24 MiB and derive tm from Fp.
    cap = max(128, ((24 << 20) // (6 * fp)) // 128 * 128)
    tm = min(block_rows, cap)
    n8 = _round_up(n, 8)
    if n8 <= tm:
        return n8, n8                       # single tile, full-extent block
    tm = max(128, tm // 128 * 128)          # lane-dense output tile
    return tm, _round_up(n, tm)


def _vmem_limit_bytes(tm, cc, hp, fp, weight_bufs):
    weights = weight_bufs * (2 * (cc * hp + hp * fp + fp * hp)   # bf16 weights
                             + 4 * (8 * hp + fp))                # f32 vecs + ff1_b
    io = 2 * tm * cc * 4 + 2 * 2 * tm * 4                        # dbl-buffered in/out
    live = tm * (6 * fp + 8 * hp)                                # f32/bf16 temporaries
    need = weights + io + live + (1 << 20)
    limit = min(max(2 * need, 32 << 20), 100 << 20)
    try:
        cap = pltpu.get_tpu_info().vmem_capacity_bytes
        limit = min(limit, int(cap * 0.8))                       # v7x: ~51 MiB cap
    except Exception:
        limit = min(limit, 48 << 20)                             # safe on all gens
    return int(limit)


# --------------------------------------------------------------------------
# pallas_call wrapper
# --------------------------------------------------------------------------
def encode_scores(combined, w, *, h, block_rows, single_buffer_weights):
    """Returns [2, n_pad]: row 0 = z @ fc_w[:H], row 1 = z @ fc_w[H:]."""
    n, cc = combined.shape
    hp, fp = w["ff1_w"].shape

    tm, n_pad = _choose_tiles(n, fp, block_rows)
    c = combined if n_pad == n else jnp.pad(combined, ((0, n_pad - n), (0, 0)))

    def weight_spec(shape):
        idx = lambda i, _nd=len(shape): (0,) * _nd
        if single_buffer_weights:
            # grid-invariant blocks: no second (double-buffer) VMEM copy
            return pl.BlockSpec(shape, idx, pipeline_mode=pl.Buffered(1))
        return pl.BlockSpec(shape, idx)

    vmem = _vmem_limit_bytes(tm, cc, hp, fp, 1 if single_buffer_weights else 2)

    out = pl.pallas_call(
        functools.partial(encode_kernel, h_real=h),
        out_shape=jax.ShapeDtypeStruct((2, n_pad), jnp.float32),
        grid=(n_pad // tm,),
        in_specs=[
            pl.BlockSpec((tm, cc), lambda i: (i, 0)),   # natural-width row stream
            weight_spec((cc, hp)),                      # W_enc   (bf16)
            weight_spec((hp, fp)),                      # ff1_w   (bf16)
            weight_spec((fp, hp)),                      # ff2_w   (bf16)
            weight_spec((8, hp)),                       # packed f32 vectors
            weight_spec((1, fp)),                       # ff1_b   (f32)
        ],
        out_specs=pl.BlockSpec((2, tm), lambda i: (0, i)),  # lane-dense output
        compiler_params=_CompilerParams(
            dimension_semantics=("parallel",),          # megacore on v7x
            vmem_limit_bytes=vmem),
    )(c, w["w_enc"], w["ff1_w"], w["ff2_w"], w["vecs"], w["ff1_b"])
    return out


@functools.partial(jax.jit,
                   static_argnames=("h", "block_rows", "single_buffer_weights"))
def _forward_impl(x, x_additional, edge_label_index, weights, *, h, block_rows,
                  single_buffer_weights):
    combined = jnp.concatenate([x, x_additional], axis=1)
    a = encode_scores(combined, weights, h=h, block_rows=block_rows,
                      single_buffer_weights=single_buffer_weights)
    # decode = scalar gather + add (exact fold of fc(cat([src, dst])))
    return (a[0, edge_label_index[0]]
            + a[1, edge_label_index[1]]
            + weights["fc_b"][0, 0])


def transformer_lp_forward(x, x_additional, edge_label_index, weights, h,
                           block_rows=512):
    try:
        return _forward_impl(x, x_additional, edge_label_index, weights,
                             h=h, block_rows=block_rows,
                             single_buffer_weights=True)
    except Exception:
        # pl.Buffered(1) / pipeline_mode not supported by this jax version:
        # fall back to default double-buffered weight blocks.
        return _forward_impl(x, x_additional, edge_label_index, weights,
                             h=h, block_rows=block_rows,
                             single_buffer_weights=False)


# --------------------------------------------------------------------------
# One-time parameter packing (hoisted out of the per-call path)
# --------------------------------------------------------------------------
def pack_params(p):
    cc, h = p["emb_w"].shape
    hp = _round_up(h, 128)
    fp = _round_up(4 * h, 128)

    # Fold seq-len-1 attention chain + residual into the embedding matmul:
    #   x + attn(x) = c @ emb_w @ (I + wv@wo) + emb_b @ (I + wv@wo) + bv@wo + bo
    m = jnp.eye(h, dtype=jnp.float32) + p["wv"] @ p["wo"]
    w_enc = p["emb_w"] @ m                                        # [Cc, H]
    b_enc = p["emb_b"] @ m + p["bv"] @ p["wo"] + p["bo"]          # [1, H]

    w_src = p["fc_w"][:h, 0][None, :]                             # [1, H]
    w_dst = p["fc_w"][h:, 0][None, :]                             # [1, H]
    vecs = jnp.concatenate(
        [b_enc, p["g1"], p["b1"], p["ff2_b"], p["g2"], p["b2"], w_src, w_dst],
        axis=0)                                                   # [8, H]

    weights = {
        "w_enc": _pad2(w_enc, cc, hp).astype(jnp.bfloat16),
        "ff1_w": _pad2(p["ff1_w"], hp, fp).astype(jnp.bfloat16),
        "ff2_w": _pad2(p["ff2_w"], fp, hp).astype(jnp.bfloat16),
        "vecs": _pad2(vecs, 8, hp),                               # f32
        "ff1_b": _pad2(p["ff1_b"], 1, fp),                        # f32
        "fc_b": p["fc_b"],                                        # f32 [1,1]
    }
    return weights, h


# --------------------------------------------------------------------------
# Deterministic parameter init (shapes from TransformerLP.__init__)
# --------------------------------------------------------------------------
def init_params(key, c_comb, h):
    ks = jax.random.split(key, 14)

    def u(k, shape, fan_in):
        s = 1.0 / math.sqrt(fan_in)
        return jax.random.uniform(k, shape, jnp.float32, -s, s)

    return {
        # attention Linear exists in the module but provably cannot affect the
        # output (softmax over one column == 1); kept for reference fidelity.
        "attn_w": u(ks[0], (c_comb, 1), c_comb),
        "attn_b": u(ks[1], (1, 1), c_comb),
        "emb_w": u(ks[2], (c_comb, h), c_comb),
        "emb_b": u(ks[3], (1, h), c_comb),
        # MultiheadAttention: only V / out_proj matter (seq_len == 1).
        "wv": u(ks[4], (h, h), h),
        "bv": u(ks[5], (1, h), h),
        "wo": u(ks[6], (h, h), h),
        "bo": u(ks[7], (1, h), h),
        "g1": jnp.ones((1, h), jnp.float32),
        "b1": jnp.zeros((1, h), jnp.float32),
        "ff1_w": u(ks[8], (h, 4 * h), h),
        "ff1_b": u(ks[9], (1, 4 * h), h),
        "ff2_w": u(ks[10], (4 * h, h), 4 * h),
        "ff2_b": u(ks[11], (1, h), 4 * h),
        "g2": jnp.ones((1, h), jnp.float32),
        "b2": jnp.zeros((1, h), jnp.float32),
        "fc_w": u(ks[12], (2 * h, 1), 2 * h),
        "fc_b": u(ks[13], (1, 1), 2 * h),
    }


# --------------------------------------------------------------------------
# Pure-JAX f32 reference (mirrors the PyTorch forward, eval mode)
# --------------------------------------------------------------------------
def reference_forward(x, x_additional, edge_label_index, p):
    c = jnp.concatenate([x, x_additional], axis=1)
    scores = c @ p["attn_w"] + p["attn_b"]
    w = jax.nn.softmax(scores, axis=1)
    att = w * c
    z = att @ p["emb_w"] + p["emb_b"]
    v = z @ p["wv"] + p["bv"]
    attn_out = v @ p["wo"] + p["bo"]
    z = z + attn_out
    mu = z.mean(-1, keepdims=True)
    var = ((z - mu) ** 2).mean(-1, keepdims=True)
    z = (z - mu) / jnp.sqrt(var + LN_EPS) * p["g1"] + p["b1"]
    hdn = jnp.maximum(z @ p["ff1_w"] + p["ff1_b"], 0.0)
    ff = hdn @ p["ff2_w"] + p["ff2_b"]
    z = z + ff
    mu = z.mean(-1, keepdims=True)
    var = ((z - mu) ** 2).mean(-1, keepdims=True)
    z = (z - mu) / jnp.sqrt(var + LN_EPS) * p["g2"] + p["b2"]
    src = z[edge_label_index[0]]
    dst = z[edge_label_index[1]]
    cat = jnp.concatenate([src, dst], axis=1)
    return (cat @ p["fc_w"] + p["fc_b"])[:, 0]


# --------------------------------------------------------------------------
if __name__ == "__main__":
    IN_CH, ADD_CH, HIDDEN, NUM_HEADS = 4, 4, 32, 8
    N_NODES, N_EDGES = 16, 8

    key = jax.random.PRNGKey(0)
    kx, ka, ke, kp = jax.random.split(key, 4)

    x = jax.random.normal(kx, (N_NODES, IN_CH), jnp.float32)
    x_additional = jax.random.normal(ka, (N_NODES, ADD_CH), jnp.float32)
    edge_label_index = jax.random.randint(ke, (2, N_EDGES), 0, N_NODES,
                                          jnp.int32)

    params = init_params(kp, IN_CH + ADD_CH, HIDDEN)
    weights, h = pack_params(params)            # one-time prep (hoisted)

    out = transformer_lp_forward(x, x_additional, edge_label_index, weights, h)
    out = jax.block_until_ready(out)

    ref = reference_forward(x, x_additional, edge_label_index, params)
    assert out.shape == (N_EDGES,)
    # bf16 MXU operands bound the error at ~1e-3..1e-2 vs the f32 reference.
    assert jnp.allclose(out, ref, rtol=2e-2, atol=2e-2), (out, ref)

    print("KERNEL_OK")
</pallas_src>

<mosaic_0001>
module attributes {stable_mosaic.version = 11 : i64} {
  func.func @encode_kernel(%arg0: i32, %arg1: memref<16x8xf32, #tpu.memory_space<vmem>>, %arg2: memref<8x128xbf16, #tpu.memory_space<vmem>>, %arg3: memref<128x128xbf16, #tpu.memory_space<vmem>>, %arg4: memref<128x128xbf16, #tpu.memory_space<vmem>>, %arg5: memref<8x128xf32, #tpu.memory_space<vmem>>, %arg6: memref<1x128xf32, #tpu.memory_space<vmem>>, %arg7: memref<2x16xf32, #tpu.memory_space<vmem>>) attributes {dimension_semantics = [#tpu.dimension_semantics<parallel>], iteration_bounds = array<i64: 1>, scalar_prefetch = 0 : i64, scratch_operands = 0 : i64, tpu.core_type = #tpu.core_type<tc>, window_params = [{transform_indices = @transform_0, window_bounds = array<i64: 16, 8>}, {pipeline_mode = #tpu.pipeline_mode<synchronous>, transform_indices = @transform_1, window_bounds = array<i64: 8, 128>}, {pipeline_mode = #tpu.pipeline_mode<synchronous>, transform_indices = @transform_2, window_bounds = array<i64: 128, 128>}, {pipeline_mode = #tpu.pipeline_mode<synchronous>, transform_indices = @transform_3, window_bounds = array<i64: 128, 128>}, {pipeline_mode = #tpu.pipeline_mode<synchronous>, transform_indices = @transform_4, window_bounds = array<i64: 8, 128>}, {pipeline_mode = #tpu.pipeline_mode<synchronous>, transform_indices = @transform_5, window_bounds = array<i64: 1, 128>}, {transform_indices = @transform_6, window_bounds = array<i64: 2, 16>}]} {
    %c0 = arith.constant 0 : index
    %c0_0 = arith.constant 0 : index
    %0 = vector.load %arg5[%c0, %c0_0] : memref<8x128xf32, #tpu.memory_space<vmem>>, vector<1x128xf32>
    %c1 = arith.constant 1 : index
    %c0_1 = arith.constant 0 : index
    %1 = vector.load %arg5[%c1, %c0_1] : memref<8x128xf32, #tpu.memory_space<vmem>>, vector<1x128xf32>
    %c2 = arith.constant 2 : index
    %c0_2 = arith.constant 0 : index
    %2 = vector.load %arg5[%c2, %c0_2] : memref<8x128xf32, #tpu.memory_space<vmem>>, vector<1x128xf32>
    %c3 = arith.constant 3 : index
    %c0_3 = arith.constant 0 : index
    %3 = vector.load %arg5[%c3, %c0_3] : memref<8x128xf32, #tpu.memory_space<vmem>>, vector<1x128xf32>
    %c4 = arith.constant 4 : index
    %c0_4 = arith.constant 0 : index
    %4 = vector.load %arg5[%c4, %c0_4] : memref<8x128xf32, #tpu.memory_space<vmem>>, vector<1x128xf32>
    %c5 = arith.constant 5 : index
    %c0_5 = arith.constant 0 : index
    %5 = vector.load %arg5[%c5, %c0_5] : memref<8x128xf32, #tpu.memory_space<vmem>>, vector<1x128xf32>
    %c6 = arith.constant 6 : index
    %c0_6 = arith.constant 0 : index
    %6 = vector.load %arg5[%c6, %c0_6] : memref<8x128xf32, #tpu.memory_space<vmem>>, vector<2x128xf32>
    %7 = tpu.iota {dimensions = array<i32: 1>} : vector<1x128xi32>
    %c32_i32 = arith.constant 32 : i32
    %8 = vector.broadcast %c32_i32 : i32 to vector<1x128xi32>
    %9 = arith.cmpi slt, %7, %8 : vector<1x128xi32>
    %10 = arith.extui %9 : vector<1x128xi1> to vector<1x128xi32>
    %11 = arith.sitofp %10 : vector<1x128xi32> to vector<1x128xf32>
    %c0_7 = arith.constant 0 : index
    %c0_8 = arith.constant 0 : index
    %12 = vector.load %arg1[%c0_7, %c0_8] : memref<16x8xf32, #tpu.memory_space<vmem>>, vector<16x8xf32>
    %13 = arith.truncf %12 : vector<16x8xf32> to vector<16x8xbf16>
    %c0_9 = arith.constant 0 : index
    %c0_10 = arith.constant 0 : index
    %14 = vector.load %arg2[%c0_9, %c0_10] : memref<8x128xbf16, #tpu.memory_space<vmem>>, vector<8x128xbf16>
    %cst = arith.constant dense<0.000000e+00> : vector<16x128xf32>
    %15 = tpu.matmul %13, %14, %cst {dimension_numbers = #tpu.dot_dimension_numbers<[1], [0], [0], [1], [0, 0, 1, 1], [], []>} : vector<16x8xbf16>, vector<8x128xbf16>, vector<16x128xf32> -> vector<16x128xf32>
    %16 = vector.broadcast %0 : vector<1x128xf32> to vector<16x128xf32>
    %17 = arith.addf %15, %16 : vector<16x128xf32>
    %cst_11 = arith.constant dense<0.000000e+00> : vector<16xf32>
    %18 = vector.multi_reduction <add>, %17, %cst_11 [1] : vector<16x128xf32> to vector<16xf32>
    %19 = vector.shape_cast %18 : vector<16xf32> to vector<16x1xf32>
    %cst_12 = arith.constant 3.125000e-02 : f32
    %20 = vector.broadcast %cst_12 : f32 to vector<16x1xf32>
    %21 = arith.mulf %19, %20 : vector<16x1xf32>
    %22 = vector.broadcast %21 : vector<16x1xf32> to vector<16x128xf32>
    %23 = arith.subf %17, %22 : vector<16x128xf32>
    %24 = vector.broadcast %11 : vector<1x128xf32> to vector<16x128xf32>
    %25 = arith.mulf %23, %24 : vector<16x128xf32>
    %26 = arith.mulf %25, %25 : vector<16x128xf32>
    %cst_13 = arith.constant dense<0.000000e+00> : vector<16xf32>
    %27 = vector.multi_reduction <add>, %26, %cst_13 [1] : vector<16x128xf32> to vector<16xf32>
    %28 = vector.shape_cast %27 : vector<16xf32> to vector<16x1xf32>
    %cst_14 = arith.constant 3.125000e-02 : f32
    %29 = vector.broadcast %cst_14 : f32 to vector<16x1xf32>
    %30 = arith.mulf %28, %29 : vector<16x1xf32>
    %cst_15 = arith.constant 9.99999974E-6 : f32
    %31 = vector.broadcast %cst_15 : f32 to vector<16x1xf32>
    %32 = arith.addf %30, %31 : vector<16x1xf32>
    %33 = math.rsqrt %32 : vector<16x1xf32>
    %34 = vector.broadcast %33 : vector<16x1xf32> to vector<16x128xf32>
    %35 = arith.mulf %25, %34 : vector<16x128xf32>
    %36 = vector.broadcast %1 : vector<1x128xf32> to vector<16x128xf32>
    %37 = arith.mulf %35, %36 : vector<16x128xf32>
    %38 = vector.broadcast %2 : vector<1x128xf32> to vector<16x128xf32>
    %39 = arith.addf %37, %38 : vector<16x128xf32>
    %40 = arith.truncf %39 : vector<16x128xf32> to vector<16x128xbf16>
    %c0_16 = arith.constant 0 : index
    %c0_17 = arith.constant 0 : index
    %41 = vector.load %arg3[%c0_16, %c0_17] : memref<128x128xbf16, #tpu.memory_space<vmem>>, vector<128x128xbf16>
    %cst_18 = arith.constant dense<0.000000e+00> : vector<16x128xf32>
    %42 = tpu.matmul %40, %41, %cst_18 {dimension_numbers = #tpu.dot_dimension_numbers<[1], [0], [0], [1], [0, 0, 1, 1], [], []>} : vector<16x128xbf16>, vector<128x128xbf16>, vector<16x128xf32> -> vector<16x128xf32>
    %c0_19 = arith.constant 0 : index
    %c0_20 = arith.constant 0 : index
    %43 = vector.load %arg6[%c0_19, %c0_20] : memref<1x128xf32, #tpu.memory_space<vmem>>, vector<1x128xf32>
    %44 = vector.broadcast %43 : vector<1x128xf32> to vector<16x128xf32>
    %45 = arith.addf %42, %44 : vector<16x128xf32>
    %cst_21 = arith.constant 0.000000e+00 : f32
    %46 = vector.broadcast %cst_21 : f32 to vector<16x128xf32>
    %47 = arith.maximumf %45, %46 : vector<16x128xf32>
    %48 = arith.truncf %47 : vector<16x128xf32> to vector<16x128xbf16>
    %c0_22 = arith.constant 0 : index
    %c0_23 = arith.constant 0 : index
    %49 = vector.load %arg4[%c0_22, %c0_23] : memref<128x128xbf16, #tpu.memory_space<vmem>>, vector<128x128xbf16>
    %cst_24 = arith.constant dense<0.000000e+00> : vector<16x128xf32>
    %50 = tpu.matmul %48, %49, %cst_24 {dimension_numbers = #tpu.dot_dimension_numbers<[1], [0], [0], [1], [0, 0, 1, 1], [], []>} : vector<16x128xbf16>, vector<128x128xbf16>, vector<16x128xf32> -> vector<16x128xf32>
    %51 = vector.broadcast %3 : vector<1x128xf32> to vector<16x128xf32>
    %52 = arith.addf %50, %51 : vector<16x128xf32>
    %53 = arith.addf %39, %52 : vector<16x128xf32>
    %cst_25 = arith.constant dense<0.000000e+00> : vector<16xf32>
    %54 = vector.multi_reduction <add>, %53, %cst_25 [1] : vector<16x128xf32> to vector<16xf32>
    %55 = vector.shape_cast %54 : vector<16xf32> to vector<16x1xf32>
    %cst_26 = arith.constant 3.125000e-02 : f32
    %56 = vector.broadcast %cst_26 : f32 to vector<16x1xf32>
    %57 = arith.mulf %55, %56 : vector<16x1xf32>
    %58 = vector.broadcast %57 : vector<16x1xf32> to vector<16x128xf32>
    %59 = arith.subf %53, %58 : vector<16x128xf32>
    %60 = vector.broadcast %11 : vector<1x128xf32> to vector<16x128xf32>
    %61 = arith.mulf %59, %60 : vector<16x128xf32>
    %62 = arith.mulf %61, %61 : vector<16x128xf32>
    %cst_27 = arith.constant dense<0.000000e+00> : vector<16xf32>
    %63 = vector.multi_reduction <add>, %62, %cst_27 [1] : vector<16x128xf32> to vector<16xf32>
    %64 = vector.shape_cast %63 : vector<16xf32> to vector<16x1xf32>
    %cst_28 = arith.constant 3.125000e-02 : f32
    %65 = vector.broadcast %cst_28 : f32 to vector<16x1xf32>
    %66 = arith.mulf %64, %65 : vector<16x1xf32>
    %cst_29 = arith.constant 9.99999974E-6 : f32
    %67 = vector.broadcast %cst_29 : f32 to vector<16x1xf32>
    %68 = arith.addf %66, %67 : vector<16x1xf32>
    %69 = math.rsqrt %68 : vector<16x1xf32>
    %70 = vector.broadcast %69 : vector<16x1xf32> to vector<16x128xf32>
    %71 = arith.mulf %61, %70 : vector<16x128xf32>
    %72 = vector.broadcast %4 : vector<1x128xf32> to vector<16x128xf32>
    %73 = arith.mulf %71, %72 : vector<16x128xf32>
    %74 = vector.broadcast %5 : vector<1x128xf32> to vector<16x128xf32>
    %75 = arith.addf %73, %74 : vector<16x128xf32>
    %cst_30 = arith.constant dense<0.000000e+00> : vector<2x16xf32>
    %76 = tpu.matmul %6, %75, %cst_30 {dimension_numbers = #tpu.dot_dimension_numbers<[1], [1], [0], [0], [0, 0, 1, 0], [], []>} : vector<2x128xf32>, vector<16x128xf32>, vector<2x16xf32> -> vector<2x16xf32>
    %c0_31 = arith.constant 0 : index
    %c0_32 = arith.constant 0 : index
    %77 = vector.load %arg7[%c0_31, %c0_32] : memref<2x16xf32, #tpu.memory_space<vmem>>, vector<2x16xf32>
    tpu.vector_store %arg7[%c0_31, %c0_32], %76 {strides = array<i32>} : memref<2x16xf32, #tpu.memory_space<vmem>>, vector<2x16xf32>,
    return
  }
  func.func @transform_0(%arg0: i32) -> (i32, i32) {
    %c0_i32 = arith.constant 0 : i32
    %c0_i32_0 = arith.constant 0 : i32
    return %arg0, %c0_i32 : i32, i32
  }
  func.func @transform_1(%arg0: i32) -> (i32, i32) {
    %c0_i32 = arith.constant 0 : i32
    %c0_i32_0 = arith.constant 0 : i32
    %c0_i32_1 = arith.constant 0 : i32
    return %c0_i32, %c0_i32_0 : i32, i32
  }
  func.func @transform_2(%arg0: i32) -> (i32, i32) {
    %c0_i32 = arith.constant 0 : i32
    %c0_i32_0 = arith.constant 0 : i32
    %c0_i32_1 = arith.constant 0 : i32
    return %c0_i32, %c0_i32_0 : i32, i32
  }
  func.func @transform_3(%arg0: i32) -> (i32, i32) {
    %c0_i32 = arith.constant 0 : i32
    %c0_i32_0 = arith.constant 0 : i32
    %c0_i32_1 = arith.constant 0 : i32
    return %c0_i32, %c0_i32_0 : i32, i32
  }
  func.func @transform_4(%arg0: i32) -> (i32, i32) {
    %c0_i32 = arith.constant 0 : i32
    %c0_i32_0 = arith.constant 0 : i32
    %c0_i32_1 = arith.constant 0 : i32
    return %c0_i32, %c0_i32_0 : i32, i32
  }
  func.func @transform_5(%arg0: i32) -> (i32, i32) {
    %c0_i32 = arith.constant 0 : i32
    %c0_i32_0 = arith.constant 0 : i32
    %c0_i32_1 = arith.constant 0 : i32
    return %c0_i32, %c0_i32_0 : i32, i32
  }
  func.func @transform_6(%arg0: i32) -> (i32, i32) {
    %c0_i32 = arith.constant 0 : i32
    %c0_i32_0 = arith.constant 0 : i32
    return %c0_i32, %arg0 : i32, i32
  }
}

module attributes {stable_mosaic.version = 11 : i64} {
  func.func @encode_kernel(%arg0: i32, %arg1: memref<16x8xf32, #tpu.memory_space<vmem>>, %arg2: memref<8x128xbf16, #tpu.memory_space<vmem>>, %arg3: memref<128x128xbf16, #tpu.memory_space<vmem>>, %arg4: memref<128x128xbf16, #tpu.memory_space<vmem>>, %arg5: memref<8x128xf32, #tpu.memory_space<vmem>>, %arg6: memref<1x128xf32, #tpu.memory_space<vmem>>, %arg7: memref<2x16xf32, #tpu.memory_space<vmem>>) attributes {dimension_semantics = [#tpu.dimension_semantics<parallel>], iteration_bounds = array<i64: 1>, scalar_prefetch = 0 : i64, scratch_operands = 0 : i64, tpu.core_type = #tpu.core_type<tc>, window_params = [{transform_indices = @transform_0, window_bounds = array<i64: 16, 8>}, {pipeline_mode = #tpu.pipeline_mode<synchronous>, transform_indices = @transform_1, window_bounds = array<i64: 8, 128>}, {pipeline_mode = #tpu.pipeline_mode<synchronous>, transform_indices = @transform_2, window_bounds = array<i64: 128, 128>}, {pipeline_mode = #tpu.pipeline_mode<synchronous>, transform_indices = @transform_3, window_bounds = array<i64: 128, 128>}, {pipeline_mode = #tpu.pipeline_mode<synchronous>, transform_indices = @transform_4, window_bounds = array<i64: 8, 128>}, {pipeline_mode = #tpu.pipeline_mode<synchronous>, transform_indices = @transform_5, window_bounds = array<i64: 1, 128>}, {transform_indices = @transform_6, window_bounds = array<i64: 2, 16>}]} {
    %c0 = arith.constant 0 : index
    %c0_0 = arith.constant 0 : index
    %0 = vector.load %arg5[%c0, %c0_0] : memref<8x128xf32, #tpu.memory_space<vmem>>, vector<1x128xf32>
    %c1 = arith.constant 1 : index
    %c0_1 = arith.constant 0 : index
    %1 = vector.load %arg5[%c1, %c0_1] : memref<8x128xf32, #tpu.memory_space<vmem>>, vector<1x128xf32>
    %c2 = arith.constant 2 : index
    %c0_2 = arith.constant 0 : index
    %2 = vector.load %arg5[%c2, %c0_2] : memref<8x128xf32, #tpu.memory_space<vmem>>, vector<1x128xf32>
    %c3 = arith.constant 3 : index
    %c0_3 = arith.constant 0 : index
    %3 = vector.load %arg5[%c3, %c0_3] : memref<8x128xf32, #tpu.memory_space<vmem>>, vector<1x128xf32>
    %c4 = arith.constant 4 : index
    %c0_4 = arith.constant 0 : index
    %4 = vector.load %arg5[%c4, %c0_4] : memref<8x128xf32, #tpu.memory_space<vmem>>, vector<1x128xf32>
    %c5 = arith.constant 5 : index
    %c0_5 = arith.constant 0 : index
    %5 = vector.load %arg5[%c5, %c0_5] : memref<8x128xf32, #tpu.memory_space<vmem>>, vector<1x128xf32>
    %c6 = arith.constant 6 : index
    %c0_6 = arith.constant 0 : index
    %6 = vector.load %arg5[%c6, %c0_6] : memref<8x128xf32, #tpu.memory_space<vmem>>, vector<2x128xf32>
    %7 = tpu.iota {dimensions = array<i32: 1>} : vector<1x128xi32>
    %c32_i32 = arith.constant 32 : i32
    %8 = vector.broadcast %c32_i32 : i32 to vector<1x128xi32>
    %9 = arith.cmpi slt, %7, %8 : vector<1x128xi32>
    %10 = arith.extui %9 : vector<1x128xi1> to vector<1x128xi32>
    %11 = arith.sitofp %10 : vector<1x128xi32> to vector<1x128xf32>
    %c0_7 = arith.constant 0 : index
    %c0_8 = arith.constant 0 : index
    %12 = vector.load %arg1[%c0_7, %c0_8] : memref<16x8xf32, #tpu.memory_space<vmem>>, vector<16x8xf32>
    %13 = arith.truncf %12 : vector<16x8xf32> to vector<16x8xbf16>
    %c0_9 = arith.constant 0 : index
    %c0_10 = arith.constant 0 : index
    %14 = vector.load %arg2[%c0_9, %c0_10] : memref<8x128xbf16, #tpu.memory_space<vmem>>, vector<8x128xbf16>
    %cst = arith.constant dense<0.000000e+00> : vector<16x128xf32>
    %15 = tpu.matmul %13, %14, %cst {dimension_numbers = #tpu.dot_dimension_numbers<[1], [0], [0], [1], [0, 0, 1, 1], [], []>} : vector<16x8xbf16>, vector<8x128xbf16>, vector<16x128xf32> -> vector<16x128xf32>
    %16 = vector.broadcast %0 : vector<1x128xf32> to vector<16x128xf32>
    %17 = arith.addf %15, %16 : vector<16x128xf32>
    %cst_11 = arith.constant dense<0.000000e+00> : vector<16xf32>
    %18 = vector.multi_reduction <add>, %17, %cst_11 [1] : vector<16x128xf32> to vector<16xf32>
    %19 = vector.shape_cast %18 : vector<16xf32> to vector<16x1xf32>
    %cst_12 = arith.constant 3.125000e-02 : f32
    %20 = vector.broadcast %cst_12 : f32 to vector<16x1xf32>
    %21 = arith.mulf %19, %20 : vector<16x1xf32>
    %22 = vector.broadcast %21 : vector<16x1xf32> to vector<16x128xf32>
    %23 = arith.subf %17, %22 : vector<16x128xf32>
    %24 = vector.broadcast %11 : vector<1x128xf32> to vector<16x128xf32>
    %25 = arith.mulf %23, %24 : vector<16x128xf32>
    %26 = arith.mulf %25, %25 : vector<16x128xf32>
    %cst_13 = arith.constant dense<0.000000e+00> : vector<16xf32>
    %27 = vector.multi_reduction <add>, %26, %cst_13 [1] : vector<16x128xf32> to vector<16xf32>
    %28 = vector.shape_cast %27 : vector<16xf32> to vector<16x1xf32>
    %cst_14 = arith.constant 3.125000e-02 : f32
    %29 = vector.broadcast %cst_14 : f32 to vector<16x1xf32>
    %30 = arith.mulf %28, %29 : vector<16x1xf32>
    %cst_15 = arith.constant 9.99999974E-6 : f32
    %31 = vector.broadcast %cst_15 : f32 to vector<16x1xf32>
    %32 = arith.addf %30, %31 : vector<16x1xf32>
    %33 = math.rsqrt %32 : vector<16x1xf32>
    %34 = vector.broadcast %33 : vector<16x1xf32> to vector<16x128xf32>
    %35 = arith.mulf %25, %34 : vector<16x128xf32>
    %36 = vector.broadcast %1 : vector<1x128xf32> to vector<16x128xf32>
    %37 = arith.mulf %35, %36 : vector<16x128xf32>
    %38 = vector.broadcast %2 : vector<1x128xf32> to vector<16x128xf32>
    %39 = arith.addf %37, %38 : vector<16x128xf32>
    %40 = arith.truncf %39 : vector<16x128xf32> to vector<16x128xbf16>
    %c0_16 = arith.constant 0 : index
    %c0_17 = arith.constant 0 : index
    %41 = vector.load %arg3[%c0_16, %c0_17] : memref<128x128xbf16, #tpu.memory_space<vmem>>, vector<128x128xbf16>
    %cst_18 = arith.constant dense<0.000000e+00> : vector<16x128xf32>
    %42 = tpu.matmul %40, %41, %cst_18 {dimension_numbers = #tpu.dot_dimension_numbers<[1], [0], [0], [1], [0, 0, 1, 1], [], []>} : vector<16x128xbf16>, vector<128x128xbf16>, vector<16x128xf32> -> vector<16x128xf32>
    %c0_19 = arith.constant 0 : index
    %c0_20 = arith.constant 0 : index
    %43 = vector.load %arg6[%c0_19, %c0_20] : memref<1x128xf32, #tpu.memory_space<vmem>>, vector<1x128xf32>
    %44 = vector.broadcast %43 : vector<1x128xf32> to vector<16x128xf32>
    %45 = arith.addf %42, %44 : vector<16x128xf32>
    %cst_21 = arith.constant 0.000000e+00 : f32
    %46 = vector.broadcast %cst_21 : f32 to vector<16x128xf32>
    %47 = arith.maximumf %45, %46 : vector<16x128xf32>
    %48 = arith.truncf %47 : vector<16x128xf32> to vector<16x128xbf16>
    %c0_22 = arith.constant 0 : index
    %c0_23 = arith.constant 0 : index
    %49 = vector.load %arg4[%c0_22, %c0_23] : memref<128x128xbf16, #tpu.memory_space<vmem>>, vector<128x128xbf16>
    %cst_24 = arith.constant dense<0.000000e+00> : vector<16x128xf32>
    %50 = tpu.matmul %48, %49, %cst_24 {dimension_numbers = #tpu.dot_dimension_numbers<[1], [0], [0], [1], [0, 0, 1, 1], [], []>} : vector<16x128xbf16>, vector<128x128xbf16>, vector<16x128xf32> -> vector<16x128xf32>
    %51 = vector.broadcast %3 : vector<1x128xf32> to vector<16x128xf32>
    %52 = arith.addf %50, %51 : vector<16x128xf32>
    %53 = arith.addf %39, %52 : vector<16x128xf32>
    %cst_25 = arith.constant dense<0.000000e+00> : vector<16xf32>
    %54 = vector.multi_reduction <add>, %53, %cst_25 [1] : vector<16x128xf32> to vector<16xf32>
    %55 = vector.shape_cast %54 : vector<16xf32> to vector<16x1xf32>
    %cst_26 = arith.constant 3.125000e-02 : f32
    %56 = vector.broadcast %cst_26 : f32 to vector<16x1xf32>
    %57 = arith.mulf %55, %56 : vector<16x1xf32>
    %58 = vector.broadcast %57 : vector<16x1xf32> to vector<16x128xf32>
    %59 = arith.subf %53, %58 : vector<16x128xf32>
    %60 = vector.broadcast %11 : vector<1x128xf32> to vector<16x128xf32>
    %61 = arith.mulf %59, %60 : vector<16x128xf32>
    %62 = arith.mulf %61, %61 : vector<16x128xf32>
    %cst_27 = arith.constant dense<0.000000e+00> : vector<16xf32>
    %63 = vector.multi_reduction <add>, %62, %cst_27 [1] : vector<16x128xf32> to vector<16xf32>
    %64 = vector.shape_cast %63 : vector<16xf32> to vector<16x1xf32>
    %cst_28 = arith.constant 3.125000e-02 : f32
    %65 = vector.broadcast %cst_28 : f32 to vector<16x1xf32>
    %66 = arith.mulf %64, %65 : vector<16x1xf32>
    %cst_29 = arith.constant 9.99999974E-6 : f32
    %67 = vector.broadcast %cst_29 : f32 to vector<16x1xf32>
    %68 = arith.addf %66, %67 : vector<16x1xf32>
    %69 = math.rsqrt %68 : vector<16x1xf32>
    %70 = vector.broadcast %69 : vector<16x1xf32> to vector<16x128xf32>
    %71 = arith.mulf %61, %70 : vector<16x128xf32>
    %72 = vector.broadcast %4 : vector<1x128xf32> to vector<16x128xf32>
    %73 = arith.mulf %71, %72 : vector<16x128xf32>
    %74 = vector.broadcast %5 : vector<1x128xf32> to vector<16x128xf32>
    %75 = arith.addf %73, %74 : vector<16x128xf32>
    %cst_30 = arith.constant dense<0.000000e+00> : vector<2x16xf32>
    %76 = tpu.matmul %6, %75, %cst_30 {dimension_numbers = #tpu.dot_dimension_numbers<[1], [1], [0], [0], [0, 0, 1, 0], [], []>} : vector<2x128xf32>, vector<16x128xf32>, vector<2x16xf32> -> vector<2x16xf32>
    %c0_31 = arith.constant 0 : index
    %c0_32 = arith.constant 0 : index
    %77 = vector.load %arg7[%c0_31, %c0_32] : memref<2x16xf32, #tpu.memory_space<vmem>>, vector<2x16xf32>
    tpu.vector_store %arg7[%c0_31, %c0_32], %76 {strides = array<i32>} : memref<2x16xf32, #tpu.memory_space<vmem>>, vector<2x16xf32>,
    return
  }
  func.func @transform_0(%arg0: i32) -> (i32, i32) {
    %c0_i32 = arith.constant 0 : i32
    %c0_i32_0 = arith.constant 0 : i32
    return %arg0, %c0_i32 : i32, i32
  }
  func.func @transform_1(%arg0: i32) -> (i32, i32) {
    %c0_i32 = arith.constant 0 : i32
    %c0_i32_0 = arith.constant 0 : i32
    %c0_i32_1 = arith.constant 0 : i32
    return %c0_i32, %c0_i32_0 : i32, i32
  }
  func.func @transform_2(%arg0: i32) -> (i32, i32) {
    %c0_i32 = arith.constant 0 : i32
    %c0_i32_0 = arith.constant 0 : i32
    %c0_i32_1 = arith.constant 0 : i32
    return %c0_i32, %c0_i32_0 : i32, i32
  }
  func.func @transform_3(%arg0: i32) -> (i32, i32) {
    %c0_i32 = arith.constant 0 : i32
    %c0_i32_0 = arith.constant 0 : i32
    %c0_i32_1 = arith.constant 0 : i32
    return %c0_i32, %c0_i32_0 : i32, i32
  }
  func.func @transform_4(%arg0: i32) -> (i32, i32) {
    %c0_i32 = arith.constant 0 : i32
    %c0_i32_0 = arith.constant 0 : i32
    %c0_i32_1 = arith.constant 0 : i32
    return %c0_i32, %c0_i32_0 : i32, i32
  }
  func.func @transform_5(%arg0: i32) -> (i32, i32) {
    %c0_i32 = arith.constant 0 : i32
    %c0_i32_0 = arith.constant 0 : i32
    %c0_i32_1 = arith.constant 0 : i32
    return %c0_i32, %c0_i32_0 : i32, i32
  }
  func.func @transform_6(%arg0: i32) -> (i32, i32) {
    %c0_i32 = arith.constant 0 : i32
    %c0_i32_0 = arith.constant 0 : i32
    return %c0_i32, %arg0 : i32, i32
  }
}

</mosaic_0001>

<llo_original>
// kernel: _forward_impl.1
$region0: #{_forward_impl.1}
  #allocation0 [shape = 'u32[]', space=smem, size = 0x4, offset = 0x4, fixed_abs, tag = 'smem constant byte address 0x4 - core index']
  #allocation1 [shape = 'u32[144,128]{1,0:T(1,128)}', space=vmem, size = 0x12000, scoped, tag = 'internal scratch']
  %s0 = inlined_call_operand.vmem [shape: f32[16,8], index: 0, kind: input, shape index: {}]
  %s1 = inlined_call_operand.vmem [shape: bf16[8,128], index: 1, kind: input, shape index: {}]
  %s2 = inlined_call_operand.vmem [shape: bf16[128,128], index: 2, kind: input, shape index: {}]
  %s3 = inlined_call_operand.hbm [shape: bf16[128,128], index: 3, kind: input, shape index: {}]
  %s4 = inlined_call_operand.vmem [shape: f32[8,128], index: 4, kind: input, shape index: {}]
  %s5 = inlined_call_operand.vmem [shape: f32[1,128], index: 5, kind: input, shape index: {}]
  %s6 = inlined_call_operand.vmem [shape: f32[2,16], index: 6, kind: output, shape index: {}]
  %s7 = sld [smem:[#allocation0]]
  $region38: #{_forward_impl.1} parent=0
    _
  %s9 = ssub.s32 1, %s7
  %s10 = scalar_select 0, %s9, %s7
  $region1: #{_forward_impl.1} parent=0
    #allocation2 [shape = 'u8[32768]{0}', space=vmem, size = 0x8000, scoped, tag = 'input window, operand 3, single buffered']
    #allocation3 [shape = 's32[1]{0}', space=sflag, size = 0x4, scoped, tag = 'scoped memory for _forward_impl.1']
    %11 = vsyncpa [#allocation3], 0
    // Predicated region
    $region2: #{_forward_impl.1} parent=1 // pred_check
      _
    $region3: #{_forward_impl.1} parent=1 // pred_check_branch
      %13 = sbr.rel (0) target = $region5
    $region4: #{_forward_impl.1} parent=1 // pred_region
      _
    $region5: #{_forward_impl.1} parent=1 // pred_fallthru
      _
    // Predicated region
    $region6: #{_forward_impl.1} parent=1 // pred_check
      _
    $region7: #{_forward_impl.1} parent=1 // pred_check_branch
      %15 = sbr.rel (0) target = $region9
    $region8: #{_forward_impl.1} parent=1 // pred_region
      _
    $region9: #{_forward_impl.1} parent=1 // pred_fallthru
      _
    // Predicated region
    $region10: #{_forward_impl.1} parent=1 // pred_check
      _
    $region11: #{_forward_impl.1} parent=1 // pred_check_branch
      %17 = sbr.rel (0) target = $region13
    $region12: #{_forward_impl.1} parent=1 // pred_region
      _
    $region13: #{_forward_impl.1} parent=1 // pred_fallthru
      _
    // Predicated region
    $region14: #{_forward_impl.1} parent=1 // pred_check
      _
    $region15: #{_forward_impl.1} parent=1 // pred_check_branch
      %19 = sbr.rel (0) target = $region17
    $region16: #{_forward_impl.1} parent=1 // pred_region
      %s21 = ssub.s32 1024, 1024
      %22 = vsyncadd [#allocation3], %s21
      %s23 = sshll.u32 [#allocation2], 4
      %s24 = int_to_ptr.vmem [resolvable:$true] %s23
      %29 = dma.hbm_to_vmem [thread:$0]  %s3, 1024, %s24, [#allocation3], 64, 64, 4
    $region17: #{_forward_impl.1} parent=1 // pred_fallthru
      _
    // Predicated region
    $region18: #{_forward_impl.1} parent=1 // pred_check
      _
    $region19: #{_forward_impl.1} parent=1 // pred_check_branch
      %31 = sbr.rel (0) target = $region21
    $region20: #{_forward_impl.1} parent=1 // pred_region
      _
    $region21: #{_forward_impl.1} parent=1 // pred_fallthru
      _
    // Predicated region
    $region22: #{_forward_impl.1} parent=1 // pred_check
      _
    $region23: #{_forward_impl.1} parent=1 // pred_check_branch
      %33 = sbr.rel (0) target = $region25
    $region24: #{_forward_impl.1} parent=1 // pred_region
      _
    $region25: #{_forward_impl.1} parent=1 // pred_fallthru
      _
    // Predicated region
    $region26: #{_forward_impl.1} parent=1 // pred_check
      _
    $region27: #{_forward_impl.1} parent=1 // pred_check_branch
      %35 = sbr.rel (0) target = $region29
    $region28: #{_forward_impl.1} parent=1 // pred_region
      %36 = dma.done [#allocation3], 1024
    $region29: #{_forward_impl.1} parent=1 // pred_fallthru
      _
    %v38 = vld [vmem:[%s4] sm:$0x1]
    %v39 = vld [vmem:[%s4 + $0x1] sm:$0x1]
    %v40 = vld [vmem:[%s4 + $0x2] sm:$0x1]
    %v41 = vld [vmem:[%s4 + $0x3] sm:$0x1]
    %v42 = vld [vmem:[%s4 + $0x4] sm:$0x1]
    %v43 = vld [vmem:[%s4 + $0x5] sm:$0x1]
    %v44 = vld [vmem:[%s4 + $0x6] sm:$0x3]
    %v45 = vlaneseq
    %v46 = vand.u32 %v45, 127
    %vm47 = vcmp.lt.s32.totalorder %v46, 32
    %v48 = vsel %vm47, 1, 0
    %v49 = vcvt.s32.f32 %v48
    %v50 = vld [vmem:[%s0] sm:$0xff]
    %v51 = vld [vmem:[%s0 + $0x8] sm:$0xff]
    %v52 = vpack.c.bf16 %v51, %v50
    %v53 = vld [vmem:[%s1] sm:$0xf]
    %v54 = vlaneseq
    %v55 = vshrl.u32 %v54, 7
    %v56 = vsub.s32 0, %v55
    %v57 = vrot.slane %v38, %v56
    %vm58 = vcmask 64512
    %v60 = vsel %vm58, %v52, 0
    %vm62 = vcmask 1043456
    %v64 = vsel %vm62, %v53, 0
    %66 = vmatprep.subr.bf16.mxu0 0
    %67 = vmatpush1.bf16.msra.mxu0 0
    %68 = vmatprep.subr.bf16.mxu0 0
    %69 = vmatpush1.bf16.msra.mxu0 0
    %70 = vmatprep.subr.bf16.mxu0 0
    %71 = vmatpush1.bf16.msra.mxu0 0
    %72 = vmatprep.subr.bf16.mxu0 0
    %73 = vmatpush1.bf16.msra.mxu0 0
    %74 = vmatprep.subr.bf16.mxu0 0
    %75 = vmatpush1.bf16.msra.mxu0 0
    %76 = vmatprep.subr.bf16.mxu0 0
    %77 = vmatpush1.bf16.msra.mxu0 0
    %78 = vmatprep.subr.bf16.mxu0 0
    %79 = vmatpush1.bf16.msra.mxu0 0
    %80 = vmatprep.subr.bf16.mxu0 0
    %81 = vmatpush1.bf16.msra.mxu0 %v64
    %82 = vmatprep.subr.bf16.mxu0 0
    %83 = vmatpush2.bf16.msra.mxu0 0
    %84 = vmatprep.subr.bf16.mxu0 0
    %85 = vmatpush2.bf16.msra.mxu0 0
    %86 = vmatprep.subr.bf16.mxu0 0
    %87 = vmatpush2.bf16.msra.mxu0 0
    %88 = vmatprep.subr.bf16.mxu0 0
    %89 = vmatpush2.bf16.msra.mxu0 0
    %90 = vmatprep.subr.bf16.mxu0 0
    %91 = vmatpush2.bf16.msra.mxu0 0
    %92 = vmatprep.subr.bf16.mxu0 0
    %93 = vmatpush2.bf16.msra.mxu0 0
    %94 = vmatprep.subr.bf16.mxu0 0
    %95 = vmatpush2.bf16.msra.mxu0 0
    %96 = vmatprep.subr.bf16.mxu0 0
    %97 = vmatpush2.bf16.msra.mxu0 0
    %98 = vmatprep.mubr.bf16.mxu0 0
    %99 = vmatmul.mubr.bf16.gmra.mxu0 %v60
    %v100 = vpop.f32.mrf.mxu0
    %v101 = vadd.f32 %v57, %v100
    %v102 = vpop.f32.mrf.mxu0
    %v103 = vpop.f32.mrf.mxu0
    %v104 = vadd.f32 %v57, %v103
    %v105 = vpop.f32.mrf.mxu0
    %106 = vdwg.mxu0
    %107 = vadd.xlane.f32.xlu0 %v101
    %v108 = vpop.xlane.xlu0 %107
    %109 = vadd.xlane.f32.xlu0 %v104
    %v110 = vpop.xlane.xlu0 %109
    %v111 = vmul.f32 %v108, 0.03125
    %v112 = vmul.f32 %v110, 0.03125
    %v113 = vsub.f32 %v101, %v111
    %v114 = vsub.f32 %v104, %v112
    %v115 = vmul.f32 %v113, %v49
    %v116 = vmul.f32 %v114, %v49
    %v117 = vmul.f32 %v115, %v115
    %v118 = vmul.f32 %v116, %v116
    %119 = vadd.xlane.f32.xlu0 %v117
    %v120 = vpop.xlane.xlu0 %119
    %121 = vadd.xlane.f32.xlu0 %v118
    %v122 = vpop.xlane.xlu0 %121
    %v123 = vmul.f32 %v120, 0.03125
    %v124 = vmul.f32 %v122, 0.03125
    %v125 = vadd.f32 %v123, 1e-05
    %v126 = vadd.f32 %v124, 1e-05
    %v127 = vrsqrt.pop %v125
    %v128 = vrsqrt.pop %v126
    %v129 = vmul.f32 %v115, %v127
    %v130 = vmul.f32 %v116, %v128
    %v131 = vlaneseq
    %v132 = vshrl.u32 %v131, 7
    %v133 = vsub.s32 0, %v132
    %v134 = vrot.slane %v39, %v133
    %v135 = vmul.f32 %v129, %v134
    %v136 = vmul.f32 %v130, %v134
    %v137 = vlaneseq
    %v138 = vshrl.u32 %v137, 7
    %v139 = vsub.s32 0, %v138
    %v140 = vrot.slane %v40, %v139
    %v141 = vadd.f32 %v135, %v140
    %v142 = vadd.f32 %v136, %v140
    %v143 = vpack.c.bf16 %v142, %v141
    %v144 = vld [vmem:[%s2] sm:$0xf]
    %v145 = vld [vmem:[%s2 + $0x4] sm:$0xf]
    %v146 = vld [vmem:[%s2 + $0x8] sm:$0xf]
    %v147 = vld [vmem:[%s2 + $0xc] sm:$0xf]
    %v148 = vld [vmem:[%s2 + $0x10] sm:$0xf]
    %v149 = vld [vmem:[%s2 + $0x14] sm:$0xf]
    %v150 = vld [vmem:[%s2 + $0x18] sm:$0xf]
    %v151 = vld [vmem:[%s2 + $0x1c] sm:$0xf]
    %v152 = vld [vmem:[%s2 + $0x20] sm:$0xf]
    %v153 = vld [vmem:[%s2 + $0x24] sm:$0xf]
    %v154 = vld [vmem:[%s2 + $0x28] sm:$0xf]
    %v155 = vld [vmem:[%s2 + $0x2c] sm:$0xf]
    %v156 = vld [vmem:[%s2 + $0x30] sm:$0xf]
    %v157 = vld [vmem:[%s2 + $0x34] sm:$0xf]
    %v158 = vld [vmem:[%s2 + $0x38] sm:$0xf]
    %v159 = vld [vmem:[%s2 + $0x3c] sm:$0xf]
    %v160 = vld [vmem:[%s5] sm:$0x1]
    %v162 = vlaneseq
    %v163 = vshrl.u32 %v162, 7
    %v164 = vsub.s32 0, %v163
    %v165 = vrot.slane %v160, %v164
    %v183 = vunpack.c.l.b16 %v144
    %v184 = vunpack.c.l.b16 %v145
    %v185 = vunpack.c.l.b16 %v146
    %v186 = vunpack.c.l.b16 %v147
    %v187 = vunpack.c.l.b16 %v148
    %v188 = vunpack.c.l.b16 %v149
    %v189 = vunpack.c.l.b16 %v150
    %v190 = vunpack.c.l.b16 %v151
    %v191 = vunpack.c.l.b16 %v152
    %v192 = vunpack.c.l.b16 %v153
    %v193 = vunpack.c.l.b16 %v154
    %v194 = vunpack.c.l.b16 %v155
    %v195 = vunpack.c.l.b16 %v156
    %v196 = vunpack.c.l.b16 %v157
    %v197 = vunpack.c.l.b16 %v158
    %v198 = vunpack.c.l.b16 %v159
    %v199 = vpack.c.b16 %v184, %v183
    %v200 = vpack.c.b16 %v186, %v185
    %v201 = vpack.c.b16 %v188, %v187
    %v202 = vpack.c.b16 %v190, %v189
    %v203 = vpack.c.b16 %v192, %v191
    %v204 = vpack.c.b16 %v194, %v193
    %v205 = vpack.c.b16 %v196, %v195
    %v206 = vpack.c.b16 %v198, %v197
    %215 = vmatprep.subr.bf16.mxu0 0
    %216 = vmatpush1.bf16.msra.mxu0 %v206
    %217 = vmatprep.subr.bf16.mxu0 0
    %218 = vmatpush1.bf16.msra.mxu0 %v205
    %219 = vmatprep.subr.bf16.mxu0 0
    %220 = vmatpush1.bf16.msra.mxu0 %v204
    %221 = vmatprep.subr.bf16.mxu0 0
    %222 = vmatpush1.bf16.msra.mxu0 %v203
    %223 = vmatprep.subr.bf16.mxu0 0
    %224 = vmatpush1.bf16.msra.mxu0 %v202
    %225 = vmatprep.subr.bf16.mxu0 0
    %226 = vmatpush1.bf16.msra.mxu0 %v201
    %227 = vmatprep.subr.bf16.mxu0 0
    %228 = vmatpush1.bf16.msra.mxu0 %v200
    %229 = vmatprep.subr.bf16.mxu0 0
    %230 = vmatpush1.bf16.msra.mxu0 %v199
    %231 = vmatprep.subr.bf16.mxu0 0
    %232 = vmatpush2.bf16.msra.mxu0 0
    %233 = vmatprep.subr.bf16.mxu0 0
    %234 = vmatpush2.bf16.msra.mxu0 0
    %235 = vmatprep.subr.bf16.mxu0 0
    %236 = vmatpush2.bf16.msra.mxu0 0
    %237 = vmatprep.subr.bf16.mxu0 0
    %238 = vmatpush2.bf16.msra.mxu0 0
    %239 = vmatprep.subr.bf16.mxu0 0
    %240 = vmatpush2.bf16.msra.mxu0 0
    %241 = vmatprep.subr.bf16.mxu0 0
    %242 = vmatpush2.bf16.msra.mxu0 0
    %243 = vmatprep.subr.bf16.mxu0 0
    %244 = vmatpush2.bf16.msra.mxu0 0
    %245 = vmatprep.subr.bf16.mxu0 0
    %246 = vmatpush2.bf16.msra.mxu0 0
    %247 = vmatprep.mubr.bf16.mxu0 0
    %248 = vmatmul.mubr.bf16.gmra.mxu0 %v143
    %v249 = vpop.f32.mrf.mxu0
    %v250 = vadd.f32 %v165, %v249
    %v251 = vpop.f32.mrf.mxu0
    %v252 = vpop.f32.mrf.mxu0
    %v253 = vadd.f32 %v165, %v252
    %v254 = vpop.f32.mrf.mxu0
    %255 = vdwg.mxu0
    %v256 = vmax.f32 %v250, 0.0
    %v257 = vmax.f32 %v253, 0.0
    %v258 = vpack.c.bf16 %v257, %v256
    %v259 = vld [vmem:[#allocation2] sm:$0xf]
    %v260 = vld [vmem:[#allocation2 + $0x4] sm:$0xf]
    %v261 = vld [vmem:[#allocation2 + $0x8] sm:$0xf]
    %v262 = vld [vmem:[#allocation2 + $0xc] sm:$0xf]
    %v263 = vld [vmem:[#allocation2 + $0x10] sm:$0xf]
    %v264 = vld [vmem:[#allocation2 + $0x14] sm:$0xf]
    %v265 = vld [vmem:[#allocation2 + $0x18] sm:$0xf]
    %v266 = vld [vmem:[#allocation2 + $0x1c] sm:$0xf]
    %v267 = vld [vmem:[#allocation2 + $0x20] sm:$0xf]
    %v268 = vld [vmem:[#allocation2 + $0x24] sm:$0xf]
    %v269 = vld [vmem:[#allocation2 + $0x28] sm:$0xf]
    %v270 = vld [vmem:[#allocation2 + $0x2c] sm:$0xf]
    %v271 = vld [vmem:[#allocation2 + $0x30] sm:$0xf]
    %v272 = vld [vmem:[#allocation2 + $0x34] sm:$0xf]
    %v273 = vld [vmem:[#allocation2 + $0x38] sm:$0xf]
    %v274 = vld [vmem:[#allocation2 + $0x3c] sm:$0xf]
    %v275 = vlaneseq
    %v276 = vshrl.u32 %v275, 7
    %v277 = vsub.s32 0, %v276
    %v278 = vrot.slane %v41, %v277
    %v295 = vunpack.c.l.b16 %v259
    %v296 = vunpack.c.l.b16 %v260
    %v297 = vunpack.c.l.b16 %v261
    %v298 = vunpack.c.l.b16 %v262
    %v299 = vunpack.c.l.b16 %v263
    %v300 = vunpack.c.l.b16 %v264
    %v301 = vunpack.c.l.b16 %v265
    %v302 = vunpack.c.l.b16 %v266
    %v303 = vunpack.c.l.b16 %v267
    %v304 = vunpack.c.l.b16 %v268
    %v305 = vunpack.c.l.b16 %v269
    %v306 = vunpack.c.l.b16 %v270
    %v307 = vunpack.c.l.b16 %v271
    %v308 = vunpack.c.l.b16 %v272
    %v309 = vunpack.c.l.b16 %v273
    %v310 = vunpack.c.l.b16 %v274
    %v311 = vpack.c.b16 %v296, %v295
    %v312 = vpack.c.b16 %v298, %v297
    %v313 = vpack.c.b16 %v300, %v299
    %v314 = vpack.c.b16 %v302, %v301
    %v315 = vpack.c.b16 %v304, %v303
    %v316 = vpack.c.b16 %v306, %v305
    %v317 = vpack.c.b16 %v308, %v307
    %v318 = vpack.c.b16 %v310, %v309
    %327 = vmatprep.subr.bf16.mxu0 0
    %328 = vmatpush1.bf16.msra.mxu0 %v318
    %329 = vmatprep.subr.bf16.mxu0 0
    %330 = vmatpush1.bf16.msra.mxu0 %v317
    %331 = vmatprep.subr.bf16.mxu0 0
    %332 = vmatpush1.bf16.msra.mxu0 %v316
    %333 = vmatprep.subr.bf16.mxu0 0
    %334 = vmatpush1.bf16.msra.mxu0 %v315
    %335 = vmatprep.subr.bf16.mxu0 0
    %336 = vmatpush1.bf16.msra.mxu0 %v314
    %337 = vmatprep.subr.bf16.mxu0 0
    %338 = vmatpush1.bf16.msra.mxu0 %v313
    %339 = vmatprep.subr.bf16.mxu0 0
    %340 = vmatpush1.bf16.msra.mxu0 %v312
    %341 = vmatprep.subr.bf16.mxu0 0
    %342 = vmatpush1.bf16.msra.mxu0 %v311
    %343 = vmatprep.subr.bf16.mxu0 0
    %344 = vmatpush2.bf16.msra.mxu0 0
    %345 = vmatprep.subr.bf16.mxu0 0
    %346 = vmatpush2.bf16.msra.mxu0 0
    %347 = vmatprep.subr.bf16.mxu0 0
    %348 = vmatpush2.bf16.msra.mxu0 0
    %349 = vmatprep.subr.bf16.mxu0 0
    %350 = vmatpush2.bf16.msra.mxu0 0
    %351 = vmatprep.subr.bf16.mxu0 0
    %352 = vmatpush2.bf16.msra.mxu0 0
    %353 = vmatprep.subr.bf16.mxu0 0
    %354 = vmatpush2.bf16.msra.mxu0 0
    %355 = vmatprep.subr.bf16.mxu0 0
    %356 = vmatpush2.bf16.msra.mxu0 0
    %357 = vmatprep.subr.bf16.mxu0 0
    %358 = vmatpush2.bf16.msra.mxu0 0
    %359 = vmatprep.mubr.bf16.mxu0 0
    %360 = vmatmul.mubr.bf16.gmra.mxu0 %v258
    %v361 = vpop.f32.mrf.mxu0
    %v362 = vadd.f32 %v278, %v361
    %v363 = vpop.f32.mrf.mxu0
    %v364 = vpop.f32.mrf.mxu0
    %v365 = vadd.f32 %v278, %v364
    %v366 = vpop.f32.mrf.mxu0
    %367 = vdwg.mxu0
    %v368 = vadd.f32 %v141, %v362
    %v369 = vadd.f32 %v142, %v365
    %370 = vadd.xlane.f32.xlu0 %v368
    %v371 = vpop.xlane.xlu0 %370
    %372 = vadd.xlane.f32.xlu0 %v369
    %v373 = vpop.xlane.xlu0 %372
    %v374 = vmul.f32 %v371, 0.03125
    %v375 = vmul.f32 %v373, 0.03125
    %v376 = vsub.f32 %v368, %v374
    %v377 = vsub.f32 %v369, %v375
    %v378 = vmul.f32 %v376, %v49
    %v379 = vmul.f32 %v377, %v49
    %v380 = vmul.f32 %v378, %v378
    %v381 = vmul.f32 %v379, %v379
    %382 = vadd.xlane.f32.xlu0 %v380
    %v383 = vpop.xlane.xlu0 %382
    %384 = vadd.xlane.f32.xlu0 %v381
    %v385 = vpop.xlane.xlu0 %384
    %v386 = vmul.f32 %v383, 0.03125
    %v387 = vmul.f32 %v385, 0.03125
    %v388 = vadd.f32 %v386, 1e-05
    %v389 = vadd.f32 %v387, 1e-05
    %v390 = vrsqrt.pop %v388
    %v391 = vrsqrt.pop %v389
    %v392 = vmul.f32 %v378, %v390
    %v393 = vmul.f32 %v379, %v391
    %v394 = vlaneseq
    %v395 = vshrl.u32 %v394, 7
    %v396 = vsub.s32 0, %v395
    %v397 = vrot.slane %v42, %v396
    %v398 = vmul.f32 %v392, %v397
    %v399 = vmul.f32 %v393, %v397
    %v400 = vlaneseq
    %v401 = vshrl.u32 %v400, 7
    %v402 = vsub.s32 0, %v401
    %v403 = vrot.slane %v43, %v402
    %v404 = vadd.f32 %v398, %v403
    %v405 = vadd.f32 %v399, %v403
    %406 = vmatprep.subr.mxu0 0.0
    %407 = vmatpush1.xpose.msra.mxu0 0.0
    %408 = vmatprep.subr.mxu0 0.0
    %409 = vmatpush1.xpose.msra.mxu0 0.0
    %410 = vmatprep.subr.mxu0 0.0
    %411 = vmatpush1.xpose.msra.mxu0 0.0
    %412 = vmatprep.subr.mxu0 0.0
    %413 = vmatpush1.xpose.msra.mxu0 0.0
    %414 = vmatprep.subr.mxu0 0.0
    %415 = vmatpush1.xpose.msra.mxu0 0.0
    %416 = vmatprep.subr.mxu0 0.0
    %417 = vmatpush1.xpose.msra.mxu0 0.0
    %418 = vmatprep.subr.mxu0 0.0
    %419 = vmatpush1.xpose.msra.mxu0 0.0
    %420 = vmatprep.subr.mxu0 0.0
    %421 = vmatpush1.xpose.msra.mxu0 0.0
    %422 = vmatprep.subr.mxu0 0.0
    %423 = vmatpush1.xpose.msra.mxu0 0.0
    %424 = vmatprep.subr.mxu0 0.0
    %425 = vmatpush1.xpose.msra.mxu0 0.0
    %426 = vmatprep.subr.mxu0 0.0
    %427 = vmatpush1.xpose.msra.mxu0 0.0
    %428 = vmatprep.subr.mxu0 0.0
    %429 = vmatpush1.xpose.msra.mxu0 0.0
    %430 = vmatprep.subr.mxu0 0.0
    %431 = vmatpush1.xpose.msra.mxu0 0.0
    %432 = vmatprep.subr.mxu0 0.0
    %433 = vmatpush1.xpose.msra.mxu0 0.0
    %434 = vmatprep.subr.mxu0 0.0
    %435 = vmatpush1.xpose.msra.mxu0 %v405
    %436 = vmatprep.subr.mxu0 0.0
    %437 = vmatpush1.xpose.msra.mxu0 %v404
    %438 = vmatprep.subr.mxu0 0.0
    %439 = vmatpush2.xpose.msra.mxu0 0.0
    %440 = vmatprep.subr.mxu0 0.0
    %441 = vmatpush2.xpose.msra.mxu0 0.0
    %442 = vmatprep.subr.mxu0 0.0
    %443 = vmatpush2.xpose.msra.mxu0 0.0
    %444 = vmatprep.subr.mxu0 0.0
    %445 = vmatpush2.xpose.msra.mxu0 0.0
    %446 = vmatprep.subr.mxu0 0.0
    %447 = vmatpush2.xpose.msra.mxu0 0.0
    %448 = vmatprep.subr.mxu0 0.0
    %449 = vmatpush2.xpose.msra.mxu0 0.0
    %450 = vmatprep.subr.mxu0 0.0
    %451 = vmatpush2.xpose.msra.mxu0 0.0
    %452 = vmatprep.subr.mxu0 0.0
    %453 = vmatpush2.xpose.msra.mxu0 0.0
    %454 = vmatprep.subr.mxu0 0.0
    %455 = vmatpush2.xpose.msra.mxu0 0.0
    %456 = vmatprep.subr.mxu0 0.0
    %457 = vmatpush2.xpose.msra.mxu0 0.0
    %458 = vmatprep.subr.mxu0 0.0
    %459 = vmatpush2.xpose.msra.mxu0 0.0
    %460 = vmatprep.subr.mxu0 0.0
    %461 = vmatpush2.xpose.msra.mxu0 0.0
    %462 = vmatprep.subr.mxu0 0.0
    %463 = vmatpush2.xpose.msra.mxu0 0.0
    %464 = vmatprep.subr.mxu0 0.0
    %465 = vmatpush2.xpose.msra.mxu0 0.0
    %466 = vmatprep.subr.mxu0 0.0
    %467 = vmatpush2.xpose.msra.mxu0 0.0
    %468 = vmatprep.subr.mxu0 0.0
    %469 = vmatpush2.xpose.msra.mxu0 0.0
    %470 = vmatprep.mubr.f32.mxu0 0.0
    %471 = vmatmul.mubr.f32.gmra.mxu0 %v44
    %v472 = vpop.f32.mrf.mxu0
    %v473 = vadd.f32 0.0, %v472
    %v474 = vpop.f32.mrf.mxu0
    %475 = vdwg.mxu0
    %vm476 = vcmask 123904
    %477 = vst.msk [vmem:[%s6] sm:$0x3] %vm476, %v473
    // Predicated region
    $region30: #{_forward_impl.1} parent=1 // pred_check
      _
    $region31: #{_forward_impl.1} parent=1 // pred_check_branch
      %479 = sbr.rel (0) target = $region33
    $region32: #{_forward_impl.1} parent=1 // pred_region
      _
    $region33: #{_forward_impl.1} parent=1 // pred_fallthru
      _
    // Predicated region
    $region34: #{_forward_impl.1} parent=1 // pred_check
      _
    $region35: #{_forward_impl.1} parent=1 // pred_check_branch
      %481 = sbr.rel (0) target = $region37
    $region36: #{_forward_impl.1} parent=1 // pred_region
      _
    $region37: #{_forward_impl.1} parent=1 // pred_fallthru
      _
    %482 = vsyncpa [#allocation3], 1

// kernel: _forward_impl.1
$region0: #{_forward_impl.1}
  #allocation0 [shape = 'u32[]', space=smem, size = 0x4, offset = 0x4, fixed_abs, tag = 'smem constant byte address 0x4 - core index']
  #allocation1 [shape = 'u32[144,128]{1,0:T(1,128)}', space=vmem, size = 0x12000, scoped, tag = 'internal scratch']
  %s0 = inlined_call_operand.vmem [shape: f32[16,8], index: 0, kind: input, shape index: {}]
  %s1 = inlined_call_operand.vmem [shape: bf16[8,128], index: 1, kind: input, shape index: {}]
  %s2 = inlined_call_operand.vmem [shape: bf16[128,128], index: 2, kind: input, shape index: {}]
  %s3 = inlined_call_operand.hbm [shape: bf16[128,128], index: 3, kind: input, shape index: {}]
  %s4 = inlined_call_operand.vmem [shape: f32[8,128], index: 4, kind: input, shape index: {}]
  %s5 = inlined_call_operand.vmem [shape: f32[1,128], index: 5, kind: input, shape index: {}]
  %s6 = inlined_call_operand.vmem [shape: f32[2,16], index: 6, kind: output, shape index: {}]
  %s7 = sld [smem:[#allocation0]]
  $region38: #{_forward_impl.1} parent=0
    _
  %s9 = ssub.s32 1, %s7
  %s10 = scalar_select 0, %s9, %s7
  $region1: #{_forward_impl.1} parent=0
    #allocation2 [shape = 'u8[32768]{0}', space=vmem, size = 0x8000, scoped, tag = 'input window, operand 3, single buffered']
    #allocation3 [shape = 's32[1]{0}', space=sflag, size = 0x4, scoped, tag = 'scoped memory for _forward_impl.1']
    %11 = vsyncpa [#allocation3], 0
    // Predicated region
    $region2: #{_forward_impl.1} parent=1 // pred_check
      _
    $region3: #{_forward_impl.1} parent=1 // pred_check_branch
      %13 = sbr.rel (0) target = $region5
    $region4: #{_forward_impl.1} parent=1 // pred_region
      _
    $region5: #{_forward_impl.1} parent=1 // pred_fallthru
      _
    // Predicated region
    $region6: #{_forward_impl.1} parent=1 // pred_check
      _
    $region7: #{_forward_impl.1} parent=1 // pred_check_branch
      %15 = sbr.rel (0) target = $region9
    $region8: #{_forward_impl.1} parent=1 // pred_region
      _
    $region9: #{_forward_impl.1} parent=1 // pred_fallthru
      _
    // Predicated region
    $region10: #{_forward_impl.1} parent=1 // pred_check
      _
    $region11: #{_forward_impl.1} parent=1 // pred_check_branch
      %17 = sbr.rel (0) target = $region13
    $region12: #{_forward_impl.1} parent=1 // pred_region
      _
    $region13: #{_forward_impl.1} parent=1 // pred_fallthru
      _
    // Predicated region
    $region14: #{_forward_impl.1} parent=1 // pred_check
      _
    $region15: #{_forward_impl.1} parent=1 // pred_check_branch
      %19 = sbr.rel (0) target = $region17
    $region16: #{_forward_impl.1} parent=1 // pred_region
      %s21 = ssub.s32 1024, 1024
      %22 = vsyncadd [#allocation3], %s21
      %s23 = sshll.u32 [#allocation2], 4
      %s24 = int_to_ptr.vmem [resolvable:$true] %s23
      %29 = dma.hbm_to_vmem [thread:$0]  %s3, 1024, %s24, [#allocation3], 64, 64, 4
    $region17: #{_forward_impl.1} parent=1 // pred_fallthru
      _
    // Predicated region
    $region18: #{_forward_impl.1} parent=1 // pred_check
      _
    $region19: #{_forward_impl.1} parent=1 // pred_check_branch
      %31 = sbr.rel (0) target = $region21
    $region20: #{_forward_impl.1} parent=1 // pred_region
      _
    $region21: #{_forward_impl.1} parent=1 // pred_fallthru
      _
    // Predicated region
    $region22: #{_forward_impl.1} parent=1 // pred_check
      _
    $region23: #{_forward_impl.1} parent=1 // pred_check_branch
      %33 = sbr.rel (0) target = $region25
    $region24: #{_forward_impl.1} parent=1 // pred_region
      _
    $region25: #{_forward_impl.1} parent=1 // pred_fallthru
      _
    // Predicated region
    $region26: #{_forward_impl.1} parent=1 // pred_check
      _
    $region27: #{_forward_impl.1} parent=1 // pred_check_branch
      %35 = sbr.rel (0) target = $region29
    $region28: #{_forward_impl.1} parent=1 // pred_region
      %36 = dma.done [#allocation3], 1024
    $region29: #{_forward_impl.1} parent=1 // pred_fallthru
      _
    %v38 = vld [vmem:[%s4] sm:$0x1]
    %v39 = vld [vmem:[%s4 + $0x1] sm:$0x1]
    %v40 = vld [vmem:[%s4 + $0x2] sm:$0x1]
    %v41 = vld [vmem:[%s4 + $0x3] sm:$0x1]
    %v42 = vld [vmem:[%s4 + $0x4] sm:$0x1]
    %v43 = vld [vmem:[%s4 + $0x5] sm:$0x1]
    %v44 = vld [vmem:[%s4 + $0x6] sm:$0x3]
    %v45 = vlaneseq
    %v46 = vand.u32 %v45, 127
    %vm47 = vcmp.lt.s32.totalorder %v46, 32
    %v48 = vsel %vm47, 1, 0
    %v49 = vcvt.s32.f32 %v48
    %v50 = vld [vmem:[%s0] sm:$0xff]
    %v51 = vld [vmem:[%s0 + $0x8] sm:$0xff]
    %v52 = vpack.c.bf16 %v51, %v50
    %v53 = vld [vmem:[%s1] sm:$0xf]
    %v54 = vlaneseq
    %v55 = vshrl.u32 %v54, 7
    %v56 = vsub.s32 0, %v55
    %v57 = vrot.slane %v38, %v56
    %vm58 = vcmask 64512
    %v60 = vsel %vm58, %v52, 0
    %vm62 = vcmask 1043456
    %v64 = vsel %vm62, %v53, 0
    %66 = vmatprep.subr.bf16.mxu0 0
    %67 = vmatpush1.bf16.msra.mxu0 0
    %68 = vmatprep.subr.bf16.mxu0 0
    %69 = vmatpush1.bf16.msra.mxu0 0
    %70 = vmatprep.subr.bf16.mxu0 0
    %71 = vmatpush1.bf16.msra.mxu0 0
    %72 = vmatprep.subr.bf16.mxu0 0
    %73 = vmatpush1.bf16.msra.mxu0 0
    %74 = vmatprep.subr.bf16.mxu0 0
    %75 = vmatpush1.bf16.msra.mxu0 0
    %76 = vmatprep.subr.bf16.mxu0 0
    %77 = vmatpush1.bf16.msra.mxu0 0
    %78 = vmatprep.subr.bf16.mxu0 0
    %79 = vmatpush1.bf16.msra.mxu0 0
    %80 = vmatprep.subr.bf16.mxu0 0
    %81 = vmatpush1.bf16.msra.mxu0 %v64
    %82 = vmatprep.subr.bf16.mxu0 0
    %83 = vmatpush2.bf16.msra.mxu0 0
    %84 = vmatprep.subr.bf16.mxu0 0
    %85 = vmatpush2.bf16.msra.mxu0 0
    %86 = vmatprep.subr.bf16.mxu0 0
    %87 = vmatpush2.bf16.msra.mxu0 0
    %88 = vmatprep.subr.bf16.mxu0 0
    %89 = vmatpush2.bf16.msra.mxu0 0
    %90 = vmatprep.subr.bf16.mxu0 0
    %91 = vmatpush2.bf16.msra.mxu0 0
    %92 = vmatprep.subr.bf16.mxu0 0
    %93 = vmatpush2.bf16.msra.mxu0 0
    %94 = vmatprep.subr.bf16.mxu0 0
    %95 = vmatpush2.bf16.msra.mxu0 0
    %96 = vmatprep.subr.bf16.mxu0 0
    %97 = vmatpush2.bf16.msra.mxu0 0
    %98 = vmatprep.mubr.bf16.mxu0 0
    %99 = vmatmul.mubr.bf16.gmra.mxu0 %v60
    %v100 = vpop.f32.mrf.mxu0
    %v101 = vadd.f32 %v57, %v100
    %v102 = vpop.f32.mrf.mxu0
    %v103 = vpop.f32.mrf.mxu0
    %v104 = vadd.f32 %v57, %v103
    %v105 = vpop.f32.mrf.mxu0
    %106 = vdwg.mxu0
    %107 = vadd.xlane.f32.xlu0 %v101
    %v108 = vpop.xlane.xlu0 %107
    %109 = vadd.xlane.f32.xlu0 %v104
    %v110 = vpop.xlane.xlu0 %109
    %v111 = vmul.f32 %v108, 0.03125
    %v112 = vmul.f32 %v110, 0.03125
    %v113 = vsub.f32 %v101, %v111
    %v114 = vsub.f32 %v104, %v112
    %v115 = vmul.f32 %v113, %v49
    %v116 = vmul.f32 %v114, %v49
    %v117 = vmul.f32 %v115, %v115
    %v118 = vmul.f32 %v116, %v116
    %119 = vadd.xlane.f32.xlu0 %v117
    %v120 = vpop.xlane.xlu0 %119
    %121 = vadd.xlane.f32.xlu0 %v118
    %v122 = vpop.xlane.xlu0 %121
    %v123 = vmul.f32 %v120, 0.03125
    %v124 = vmul.f32 %v122, 0.03125
    %v125 = vadd.f32 %v123, 1e-05
    %v126 = vadd.f32 %v124, 1e-05
    %v127 = vrsqrt.pop %v125
    %v128 = vrsqrt.pop %v126
    %v129 = vmul.f32 %v115, %v127
    %v130 = vmul.f32 %v116, %v128
    %v131 = vlaneseq
    %v132 = vshrl.u32 %v131, 7
    %v133 = vsub.s32 0, %v132
    %v134 = vrot.slane %v39, %v133
    %v135 = vmul.f32 %v129, %v134
    %v136 = vmul.f32 %v130, %v134
    %v137 = vlaneseq
    %v138 = vshrl.u32 %v137, 7
    %v139 = vsub.s32 0, %v138
    %v140 = vrot.slane %v40, %v139
    %v141 = vadd.f32 %v135, %v140
    %v142 = vadd.f32 %v136, %v140
    %v143 = vpack.c.bf16 %v142, %v141
    %v144 = vld [vmem:[%s2] sm:$0xf]
    %v145 = vld [vmem:[%s2 + $0x4] sm:$0xf]
    %v146 = vld [vmem:[%s2 + $0x8] sm:$0xf]
    %v147 = vld [vmem:[%s2 + $0xc] sm:$0xf]
    %v148 = vld [vmem:[%s2 + $0x10] sm:$0xf]
    %v149 = vld [vmem:[%s2 + $0x14] sm:$0xf]
    %v150 = vld [vmem:[%s2 + $0x18] sm:$0xf]
    %v151 = vld [vmem:[%s2 + $0x1c] sm:$0xf]
    %v152 = vld [vmem:[%s2 + $0x20] sm:$0xf]
    %v153 = vld [vmem:[%s2 + $0x24] sm:$0xf]
    %v154 = vld [vmem:[%s2 + $0x28] sm:$0xf]
    %v155 = vld [vmem:[%s2 + $0x2c] sm:$0xf]
    %v156 = vld [vmem:[%s2 + $0x30] sm:$0xf]
    %v157 = vld [vmem:[%s2 + $0x34] sm:$0xf]
    %v158 = vld [vmem:[%s2 + $0x38] sm:$0xf]
    %v159 = vld [vmem:[%s2 + $0x3c] sm:$0xf]
    %v160 = vld [vmem:[%s5] sm:$0x1]
    %v162 = vlaneseq
    %v163 = vshrl.u32 %v162, 7
    %v164 = vsub.s32 0, %v163
    %v165 = vrot.slane %v160, %v164
    %v183 = vunpack.c.l.b16 %v144
    %v184 = vunpack.c.l.b16 %v145
    %v185 = vunpack.c.l.b16 %v146
    %v186 = vunpack.c.l.b16 %v147
    %v187 = vunpack.c.l.b16 %v148
    %v188 = vunpack.c.l.b16 %v149
    %v189 = vunpack.c.l.b16 %v150
    %v190 = vunpack.c.l.b16 %v151
    %v191 = vunpack.c.l.b16 %v152
    %v192 = vunpack.c.l.b16 %v153
    %v193 = vunpack.c.l.b16 %v154
    %v194 = vunpack.c.l.b16 %v155
    %v195 = vunpack.c.l.b16 %v156
    %v196 = vunpack.c.l.b16 %v157
    %v197 = vunpack.c.l.b16 %v158
    %v198 = vunpack.c.l.b16 %v159
    %v199 = vpack.c.b16 %v184, %v183
    %v200 = vpack.c.b16 %v186, %v185
    %v201 = vpack.c.b16 %v188, %v187
    %v202 = vpack.c.b16 %v190, %v189
    %v203 = vpack.c.b16 %v192, %v191
    %v204 = vpack.c.b16 %v194, %v193
    %v205 = vpack.c.b16 %v196, %v195
    %v206 = vpack.c.b16 %v198, %v197
    %215 = vmatprep.subr.bf16.mxu0 0
    %216 = vmatpush1.bf16.msra.mxu0 %v206
    %217 = vmatprep.subr.bf16.mxu0 0
    %218 = vmatpush1.bf16.msra.mxu0 %v205
    %219 = vmatprep.subr.bf16.mxu0 0
    %220 = vmatpush1.bf16.msra.mxu0 %v204
    %221 = vmatprep.subr.bf16.mxu0 0
    %222 = vmatpush1.bf16.msra.mxu0 %v203
    %223 = vmatprep.subr.bf16.mxu0 0
    %224 = vmatpush1.bf16.msra.mxu0 %v202
    %225 = vmatprep.subr.bf16.mxu0 0
    %226 = vmatpush1.bf16.msra.mxu0 %v201
    %227 = vmatprep.subr.bf16.mxu0 0
    %228 = vmatpush1.bf16.msra.mxu0 %v200
    %229 = vmatprep.subr.bf16.mxu0 0
    %230 = vmatpush1.bf16.msra.mxu0 %v199
    %231 = vmatprep.subr.bf16.mxu0 0
    %232 = vmatpush2.bf16.msra.mxu0 0
    %233 = vmatprep.subr.bf16.mxu0 0
    %234 = vmatpush2.bf16.msra.mxu0 0
    %235 = vmatprep.subr.bf16.mxu0 0
    %236 = vmatpush2.bf16.msra.mxu0 0
    %237 = vmatprep.subr.bf16.mxu0 0
    %238 = vmatpush2.bf16.msra.mxu0 0
    %239 = vmatprep.subr.bf16.mxu0 0
    %240 = vmatpush2.bf16.msra.mxu0 0
    %241 = vmatprep.subr.bf16.mxu0 0
    %242 = vmatpush2.bf16.msra.mxu0 0
    %243 = vmatprep.subr.bf16.mxu0 0
    %244 = vmatpush2.bf16.msra.mxu0 0
    %245 = vmatprep.subr.bf16.mxu0 0
    %246 = vmatpush2.bf16.msra.mxu0 0
    %247 = vmatprep.mubr.bf16.mxu0 0
    %248 = vmatmul.mubr.bf16.gmra.mxu0 %v143
    %v249 = vpop.f32.mrf.mxu0
    %v250 = vadd.f32 %v165, %v249
    %v251 = vpop.f32.mrf.mxu0
    %v252 = vpop.f32.mrf.mxu0
    %v253 = vadd.f32 %v165, %v252
    %v254 = vpop.f32.mrf.mxu0
    %255 = vdwg.mxu0
    %v256 = vmax.f32 %v250, 0.0
    %v257 = vmax.f32 %v253, 0.0
    %v258 = vpack.c.bf16 %v257, %v256
    %v259 = vld [vmem:[#allocation2] sm:$0xf]
    %v260 = vld [vmem:[#allocation2 + $0x4] sm:$0xf]
    %v261 = vld [vmem:[#allocation2 + $0x8] sm:$0xf]
    %v262 = vld [vmem:[#allocation2 + $0xc] sm:$0xf]
    %v263 = vld [vmem:[#allocation2 + $0x10] sm:$0xf]
    %v264 = vld [vmem:[#allocation2 + $0x14] sm:$0xf]
    %v265 = vld [vmem:[#allocation2 + $0x18] sm:$0xf]
    %v266 = vld [vmem:[#allocation2 + $0x1c] sm:$0xf]
    %v267 = vld [vmem:[#allocation2 + $0x20] sm:$0xf]
    %v268 = vld [vmem:[#allocation2 + $0x24] sm:$0xf]
    %v269 = vld [vmem:[#allocation2 + $0x28] sm:$0xf]
    %v270 = vld [vmem:[#allocation2 + $0x2c] sm:$0xf]
    %v271 = vld [vmem:[#allocation2 + $0x30] sm:$0xf]
    %v272 = vld [vmem:[#allocation2 + $0x34] sm:$0xf]
    %v273 = vld [vmem:[#allocation2 + $0x38] sm:$0xf]
    %v274 = vld [vmem:[#allocation2 + $0x3c] sm:$0xf]
    %v275 = vlaneseq
    %v276 = vshrl.u32 %v275, 7
    %v277 = vsub.s32 0, %v276
    %v278 = vrot.slane %v41, %v277
    %v295 = vunpack.c.l.b16 %v259
    %v296 = vunpack.c.l.b16 %v260
    %v297 = vunpack.c.l.b16 %v261
    %v298 = vunpack.c.l.b16 %v262
    %v299 = vunpack.c.l.b16 %v263
    %v300 = vunpack.c.l.b16 %v264
    %v301 = vunpack.c.l.b16 %v265
    %v302 = vunpack.c.l.b16 %v266
    %v303 = vunpack.c.l.b16 %v267
    %v304 = vunpack.c.l.b16 %v268
    %v305 = vunpack.c.l.b16 %v269
    %v306 = vunpack.c.l.b16 %v270
    %v307 = vunpack.c.l.b16 %v271
    %v308 = vunpack.c.l.b16 %v272
    %v309 = vunpack.c.l.b16 %v273
    %v310 = vunpack.c.l.b16 %v274
    %v311 = vpack.c.b16 %v296, %v295
    %v312 = vpack.c.b16 %v298, %v297
    %v313 = vpack.c.b16 %v300, %v299
    %v314 = vpack.c.b16 %v302, %v301
    %v315 = vpack.c.b16 %v304, %v303
    %v316 = vpack.c.b16 %v306, %v305
    %v317 = vpack.c.b16 %v308, %v307
    %v318 = vpack.c.b16 %v310, %v309
    %327 = vmatprep.subr.bf16.mxu0 0
    %328 = vmatpush1.bf16.msra.mxu0 %v318
    %329 = vmatprep.subr.bf16.mxu0 0
    %330 = vmatpush1.bf16.msra.mxu0 %v317
    %331 = vmatprep.subr.bf16.mxu0 0
    %332 = vmatpush1.bf16.msra.mxu0 %v316
    %333 = vmatprep.subr.bf16.mxu0 0
    %334 = vmatpush1.bf16.msra.mxu0 %v315
    %335 = vmatprep.subr.bf16.mxu0 0
    %336 = vmatpush1.bf16.msra.mxu0 %v314
    %337 = vmatprep.subr.bf16.mxu0 0
    %338 = vmatpush1.bf16.msra.mxu0 %v313
    %339 = vmatprep.subr.bf16.mxu0 0
    %340 = vmatpush1.bf16.msra.mxu0 %v312
    %341 = vmatprep.subr.bf16.mxu0 0
    %342 = vmatpush1.bf16.msra.mxu0 %v311
    %343 = vmatprep.subr.bf16.mxu0 0
    %344 = vmatpush2.bf16.msra.mxu0 0
    %345 = vmatprep.subr.bf16.mxu0 0
    %346 = vmatpush2.bf16.msra.mxu0 0
    %347 = vmatprep.subr.bf16.mxu0 0
    %348 = vmatpush2.bf16.msra.mxu0 0
    %349 = vmatprep.subr.bf16.mxu0 0
    %350 = vmatpush2.bf16.msra.mxu0 0
    %351 = vmatprep.subr.bf16.mxu0 0
    %352 = vmatpush2.bf16.msra.mxu0 0
    %353 = vmatprep.subr.bf16.mxu0 0
    %354 = vmatpush2.bf16.msra.mxu0 0
    %355 = vmatprep.subr.bf16.mxu0 0
    %356 = vmatpush2.bf16.msra.mxu0 0
    %357 = vmatprep.subr.bf16.mxu0 0
    %358 = vmatpush2.bf16.msra.mxu0 0
    %359 = vmatprep.mubr.bf16.mxu0 0
    %360 = vmatmul.mubr.bf16.gmra.mxu0 %v258
    %v361 = vpop.f32.mrf.mxu0
    %v362 = vadd.f32 %v278, %v361
    %v363 = vpop.f32.mrf.mxu0
    %v364 = vpop.f32.mrf.mxu0
    %v365 = vadd.f32 %v278, %v364
    %v366 = vpop.f32.mrf.mxu0
    %367 = vdwg.mxu0
    %v368 = vadd.f32 %v141, %v362
    %v369 = vadd.f32 %v142, %v365
    %370 = vadd.xlane.f32.xlu0 %v368
    %v371 = vpop.xlane.xlu0 %370
    %372 = vadd.xlane.f32.xlu0 %v369
    %v373 = vpop.xlane.xlu0 %372
    %v374 = vmul.f32 %v371, 0.03125
    %v375 = vmul.f32 %v373, 0.03125
    %v376 = vsub.f32 %v368, %v374
    %v377 = vsub.f32 %v369, %v375
    %v378 = vmul.f32 %v376, %v49
    %v379 = vmul.f32 %v377, %v49
    %v380 = vmul.f32 %v378, %v378
    %v381 = vmul.f32 %v379, %v379
    %382 = vadd.xlane.f32.xlu0 %v380
    %v383 = vpop.xlane.xlu0 %382
    %384 = vadd.xlane.f32.xlu0 %v381
    %v385 = vpop.xlane.xlu0 %384
    %v386 = vmul.f32 %v383, 0.03125
    %v387 = vmul.f32 %v385, 0.03125
    %v388 = vadd.f32 %v386, 1e-05
    %v389 = vadd.f32 %v387, 1e-05
    %v390 = vrsqrt.pop %v388
    %v391 = vrsqrt.pop %v389
    %v392 = vmul.f32 %v378, %v390
    %v393 = vmul.f32 %v379, %v391
    %v394 = vlaneseq
    %v395 = vshrl.u32 %v394, 7
    %v396 = vsub.s32 0, %v395
    %v397 = vrot.slane %v42, %v396
    %v398 = vmul.f32 %v392, %v397
    %v399 = vmul.f32 %v393, %v397
    %v400 = vlaneseq
    %v401 = vshrl.u32 %v400, 7
    %v402 = vsub.s32 0, %v401
    %v403 = vrot.slane %v43, %v402
    %v404 = vadd.f32 %v398, %v403
    %v405 = vadd.f32 %v399, %v403
    %406 = vmatprep.subr.mxu0 0.0
    %407 = vmatpush1.xpose.msra.mxu0 0.0
    %408 = vmatprep.subr.mxu0 0.0
    %409 = vmatpush1.xpose.msra.mxu0 0.0
    %410 = vmatprep.subr.mxu0 0.0
    %411 = vmatpush1.xpose.msra.mxu0 0.0
    %412 = vmatprep.subr.mxu0 0.0
    %413 = vmatpush1.xpose.msra.mxu0 0.0
    %414 = vmatprep.subr.mxu0 0.0
    %415 = vmatpush1.xpose.msra.mxu0 0.0
    %416 = vmatprep.subr.mxu0 0.0
    %417 = vmatpush1.xpose.msra.mxu0 0.0
    %418 = vmatprep.subr.mxu0 0.0
    %419 = vmatpush1.xpose.msra.mxu0 0.0
    %420 = vmatprep.subr.mxu0 0.0
    %421 = vmatpush1.xpose.msra.mxu0 0.0
    %422 = vmatprep.subr.mxu0 0.0
    %423 = vmatpush1.xpose.msra.mxu0 0.0
    %424 = vmatprep.subr.mxu0 0.0
    %425 = vmatpush1.xpose.msra.mxu0 0.0
    %426 = vmatprep.subr.mxu0 0.0
    %427 = vmatpush1.xpose.msra.mxu0 0.0
    %428 = vmatprep.subr.mxu0 0.0
    %429 = vmatpush1.xpose.msra.mxu0 0.0
    %430 = vmatprep.subr.mxu0 0.0
    %431 = vmatpush1.xpose.msra.mxu0 0.0
    %432 = vmatprep.subr.mxu0 0.0
    %433 = vmatpush1.xpose.msra.mxu0 0.0
    %434 = vmatprep.subr.mxu0 0.0
    %435 = vmatpush1.xpose.msra.mxu0 %v405
    %436 = vmatprep.subr.mxu0 0.0
    %437 = vmatpush1.xpose.msra.mxu0 %v404
    %438 = vmatprep.subr.mxu0 0.0
    %439 = vmatpush2.xpose.msra.mxu0 0.0
    %440 = vmatprep.subr.mxu0 0.0
    %441 = vmatpush2.xpose.msra.mxu0 0.0
    %442 = vmatprep.subr.mxu0 0.0
    %443 = vmatpush2.xpose.msra.mxu0 0.0
    %444 = vmatprep.subr.mxu0 0.0
    %445 = vmatpush2.xpose.msra.mxu0 0.0
    %446 = vmatprep.subr.mxu0 0.0
    %447 = vmatpush2.xpose.msra.mxu0 0.0
    %448 = vmatprep.subr.mxu0 0.0
    %449 = vmatpush2.xpose.msra.mxu0 0.0
    %450 = vmatprep.subr.mxu0 0.0
    %451 = vmatpush2.xpose.msra.mxu0 0.0
    %452 = vmatprep.subr.mxu0 0.0
    %453 = vmatpush2.xpose.msra.mxu0 0.0
    %454 = vmatprep.subr.mxu0 0.0
    %455 = vmatpush2.xpose.msra.mxu0 0.0
    %456 = vmatprep.subr.mxu0 0.0
    %457 = vmatpush2.xpose.msra.mxu0 0.0
    %458 = vmatprep.subr.mxu0 0.0
    %459 = vmatpush2.xpose.msra.mxu0 0.0
    %460 = vmatprep.subr.mxu0 0.0
    %461 = vmatpush2.xpose.msra.mxu0 0.0
    %462 = vmatprep.subr.mxu0 0.0
    %463 = vmatpush2.xpose.msra.mxu0 0.0
    %464 = vmatprep.subr.mxu0 0.0
    %465 = vmatpush2.xpose.msra.mxu0 0.0
    %466 = vmatprep.subr.mxu0 0.0
    %467 = vmatpush2.xpose.msra.mxu0 0.0
    %468 = vmatprep.subr.mxu0 0.0
    %469 = vmatpush2.xpose.msra.mxu0 0.0
    %470 = vmatprep.mubr.f32.mxu0 0.0
    %471 = vmatmul.mubr.f32.gmra.mxu0 %v44
    %v472 = vpop.f32.mrf.mxu0
    %v473 = vadd.f32 0.0, %v472
    %v474 = vpop.f32.mrf.mxu0
    %475 = vdwg.mxu0
    %vm476 = vcmask 123904
    %477 = vst.msk [vmem:[%s6] sm:$0x3] %vm476, %v473
    // Predicated region
    $region30: #{_forward_impl.1} parent=1 // pred_check
      _
    $region31: #{_forward_impl.1} parent=1 // pred_check_branch
      %479 = sbr.rel (0) target = $region33
    $region32: #{_forward_impl.1} parent=1 // pred_region
      _
    $region33: #{_forward_impl.1} parent=1 // pred_fallthru
      _
    // Predicated region
    $region34: #{_forward_impl.1} parent=1 // pred_check
      _
    $region35: #{_forward_impl.1} parent=1 // pred_check_branch
      %481 = sbr.rel (0) target = $region37
    $region36: #{_forward_impl.1} parent=1 // pred_region
      _
    $region37: #{_forward_impl.1} parent=1 // pred_fallthru
      _
    %482 = vsyncpa [#allocation3], 1

</llo_original>
